<compile_context>
chip_gen: v6e
topology: v6e:2x2x1
jax: 0.10.0
libtpu: 0.0.40
codegen_flags: <defaults>
</compile_context>

<pallas_src>
import jax
import jax.numpy as jnp
from jax.experimental import pallas as pl
from jax.experimental.pallas import tpu as pltpu


# ----------------------------- Pallas kernel ------------------------------- #
def _ncct2d_kernel(p_ref, w_ref, b_ref, o_ref):
    """One (batch, M-tile) grid step.

    p_ref : (1, 2K, tm)   [Pr ; Pi] anchor-patch columns (M last -> lane dense)
    w_ref : (2N, 2K)      fused, normalized, phase-decomposed complex weight
    b_ref : (2N, 1)       fused bias [br - bi ; br + bi] per phase (f32)
    o_ref : (1, 2N, tm)   [real ; imag] phase-channel output columns (f32)
    """
    o_ref[0] = (jnp.dot(w_ref[...], p_ref[0],
                        preferred_element_type=jnp.float32)
                + b_ref[...])


# ------------------------------ helpers ------------------------------------ #
def _round_up(x, m):
    return ((x + m - 1) // m) * m


def _vmem_budget_and_cap():
    """Generation-aware VMEM tile budget and vmem_limit cap."""
    cap_bytes = 64 << 20                       # conservative fallback (v7x per-TC)
    try:
        info = pltpu.get_tpu_info()
        cb = getattr(info, "vmem_capacity_bytes", None)
        if cb:
            cap_bytes = int(cb)
    except Exception:
        pass
    budget = max(16 << 20, min(cap_bytes // 3, 56 << 20))       # ~21M v7x, ~42M v5e/v6e
    limit_cap = min(cap_bytes * 3 // 4, 100 << 20)               # ~48M v7x, ~96M v5e/v6e
    return int(budget), int(limit_cap)


def _choose_tile_m(M, two_k, two_n, in_elem, batch, vmem_budget):
    """Largest 128-multiple M-tile fitting the budget (capped at round_up(M,128)).
    For B == 1, force >= 2 M-steps so a dual-TensorCore chip (v7x) splits work."""
    cap = max(_round_up(M, 128), 128)
    cands = sorted({4096, 2048, 1024, 512, 256, 128, cap}, reverse=True)

    def vmem_need(t):
        return (2 * two_k * t * in_elem        # double-buffered patch block
                + 2 * two_n * t * 4            # double-buffered f32 output block
                + 2 * two_k * two_n * in_elem  # weight (pipeline double-buffers too)
                + 2 * two_n * 4)               # bias

    tm = 128
    for cand in cands:
        if cand > cap:
            continue
        if vmem_need(cand) <= vmem_budget:
            tm = cand
            break

    if batch == 1:
        while (M + tm - 1) // tm < 2 and tm > 128:
            tm = max(128, _round_up((tm + 1) // 2, 128))
    return tm, vmem_need(tm)


# ------------------------------ JAX wrapper -------------------------------- #
def normalized_complex_conv_transpose2d(x, w_r, w_i, b_r, b_i, *,
                                        stride=1, padding=0,
                                        output_padding=0, dilation=1,
                                        compute_dtype=jnp.bfloat16):
    """x: complex (B, Cin, H, W); w_*: (Cin, Cout, kH, kW); b_*: (Cout,)."""
    B, Cin, H, W = x.shape
    _, Cout, kH, kW = w_r.shape

    def _pair(v):
        return (v, v) if isinstance(v, int) else tuple(v)

    s_h, s_w = _pair(stride)
    p_h, p_w = _pair(padding)
    op_h, op_w = _pair(output_padding)
    d_h, d_w = _pair(dilation)

    Hout = (H - 1) * s_h - 2 * p_h + d_h * (kH - 1) + op_h + 1
    Wout = (W - 1) * s_w - 2 * p_w + d_w * (kW - 1) + op_w + 1
    assert Hout >= 1 and Wout >= 1, "invalid conv-transpose geometry"

    # ---- stride-phase (sub-pixel) geometry -------------------------------- #
    # Output oh has phase r = (oh+p) % s and anchor q = (oh+p) // s.
    # Tap kh contributes iff (kh*d) % s == r, reading input ih = q - (kh*d)//s.
    R_h = ((kH - 1) * d_h) // s_h + 1          # patch extent per anchor (h)
    R_w = ((kW - 1) * d_w) // s_w + 1
    q0_h, q1_h = p_h // s_h, (Hout - 1 + p_h) // s_h
    q0_w, q1_w = p_w // s_w, (Wout - 1 + p_w) // s_w
    Qh, Qw = q1_h - q0_h + 1, q1_w - q0_w + 1

    xr = jnp.real(x).astype(jnp.float32)
    xi = jnp.imag(x).astype(jnp.float32)

    # ---- weight normalization, hoisted out of the kernel (done once) ------ #
    def norm(w):
        w = w.astype(jnp.float32)
        w = w - jnp.mean(w)
        return w / jnp.sum(w * w)

    wr_n, wi_n = norm(w_r), norm(w_i)

    # ---- phase-decomposed weight: (Cin*R_h*R_w, s_h*s_w*Cout) ------------- #
    K = Cin * R_h * R_w
    Nc = s_h * s_w * Cout

    def phase_weight(w):
        wp = jnp.zeros((Cin, R_h, R_w, s_h, s_w, Cout), jnp.float32)
        for kh_i in range(kH):
            rh, th = (kh_i * d_h) % s_h, (kh_i * d_h) // s_h
            uh = R_h - 1 - th
            for kw_i in range(kW):
                rw, tw = (kw_i * d_w) % s_w, (kw_i * d_w) // s_w
                uw = R_w - 1 - tw
                wp = wp.at[:, uh, uw, rh, rw, :].add(w[:, :, kh_i, kw_i])
        return wp.reshape(K, Nc)

    Wr = phase_weight(wr_n)                                       # (K, Nc)
    Wi = phase_weight(wi_n)

    # fused complex weight / bias:
    #   [real | imag] = [Pr ; Pi]^T @ [[Wr, Wi], [-Wi, Wr]],  bias [br-bi ; br+bi]
    Wc = jnp.concatenate([jnp.concatenate([Wr,  Wi], axis=1),
                          jnp.concatenate([-Wi, Wr], axis=1)], axis=0)   # (2K, 2Nc)
    Wt = jnp.transpose(Wc).astype(compute_dtype)                         # (2Nc, 2K)

    br = b_r.astype(jnp.float32)
    bi = b_i.astype(jnp.float32)
    b2 = jnp.concatenate([jnp.tile(br - bi, s_h * s_w),
                          jnp.tile(br + bi, s_h * s_w)]).reshape(2 * Nc, 1)

    # ---- halo'd anchor image (zero-padded) and anchor-grid im2col --------- #
    i_lo_h, i_hi_h = q0_h - (R_h - 1), q1_h
    i_lo_w, i_hi_w = q0_w - (R_w - 1), q1_w

    def pad_anchor(z):
        padl_h, padr_h = max(0, -i_lo_h), max(0, i_hi_h - (H - 1))
        padl_w, padr_w = max(0, -i_lo_w), max(0, i_hi_w - (W - 1))
        zc = z[:, :, max(0, i_lo_h):min(H, i_hi_h + 1),
                     max(0, i_lo_w):min(W, i_hi_w + 1)]
        return jnp.pad(zc, ((0, 0), (0, 0), (padl_h, padr_h), (padl_w, padr_w)))

    def im2col(zp):            # (B, Cin, Qh+R_h-1, Qw+R_w-1) -> (B, K, Qh*Qw)
        cols = []
        for uh in range(R_h):
            for uw in range(R_w):
                cols.append(zp[:, :, uh:uh + Qh, uw:uw + Qw])
        pat = jnp.stack(cols, axis=2)               # (B, Cin, R_h*R_w, Qh, Qw)
        return pat.reshape(B, K, Qh * Qw)

    M = Qh * Qw
    Pr = im2col(pad_anchor(xr))
    Pi = im2col(pad_anchor(xi))
    P = jnp.concatenate([Pr, Pi], axis=1).astype(compute_dtype)   # (B, 2K, M)

    # ---- tiling over the anchor dim M -------------------------------------- #
    in_elem = jnp.dtype(compute_dtype).itemsize
    vmem_budget, vmem_cap = _vmem_budget_and_cap()
    tm, need = _choose_tile_m(M, 2 * K, 2 * Nc, in_elem, B, vmem_budget)
    Mpad = _round_up(M, tm)
    if Mpad != M:
        P = jnp.pad(P, ((0, 0), (0, 0), (0, Mpad - M)))

    grid = (B, Mpad // tm)
    vmem_limit = int(min(vmem_cap, max(32 << 20, 2 * need)))

    out = pl.pallas_call(
        _ncct2d_kernel,
        out_shape=jax.ShapeDtypeStruct((B, 2 * Nc, Mpad), jnp.float32),
        grid=grid,
        in_specs=[
            pl.BlockSpec((1, 2 * K, tm), lambda b, m: (b, 0, m)),
            pl.BlockSpec((2 * Nc, 2 * K), lambda b, m: (0, 0)),
            pl.BlockSpec((2 * Nc, 1), lambda b, m: (0, 0)),
        ],
        out_specs=pl.BlockSpec((1, 2 * Nc, tm), lambda b, m: (b, 0, m)),
        compiler_params=pltpu.CompilerParams(
            dimension_semantics=("parallel", "parallel"),
            # Let XLA fuse the im2col producer of P into the kernel's input
            # stream instead of materializing it in HBM.
            allow_input_fusion=[True, False, False],
            vmem_limit_bytes=vmem_limit),
    )(P, Wt, b2)

    # ---- un-tile, pixel-shuffle phases back into the spatial grid --------- #
    out = out[:, :, :M]                                          # (B, 2Nc, M)
    out = out.reshape(B, 2, s_h, s_w, Cout, Qh, Qw)
    canvas = jnp.transpose(out, (0, 1, 4, 5, 2, 6, 3))           # (B,2,Cout,Qh,s_h,Qw,s_w)
    canvas = canvas.reshape(B, 2, Cout, Qh * s_h, Qw * s_w)
    off_h, off_w = p_h % s_h, p_w % s_w
    canvas = canvas[:, :, :, off_h:off_h + Hout, off_w:off_w + Wout]
    return jax.lax.complex(canvas[:, 0], canvas[:, 1])


# ---------------------------- pure-JAX reference --------------------------- #
def _ref_conv_transpose2d(x, w, b, s, p, op, d):
    Cin, Cout, kH, kW = w.shape
    rhs = jnp.transpose(w[:, :, ::-1, ::-1], (1, 0, 2, 3))    # (Cout, Cin, kH, kW)
    pad_lo_h = d * (kH - 1) - p
    pad_lo_w = d * (kW - 1) - p
    out = jax.lax.conv_general_dilated(
        x, rhs, window_strides=(1, 1),
        padding=[(pad_lo_h, pad_lo_h + op), (pad_lo_w, pad_lo_w + op)],
        lhs_dilation=(s, s), rhs_dilation=(d, d),
        dimension_numbers=('NCHW', 'OIHW', 'NCHW'))
    return out + b[None, :, None, None]


def _reference(x, w_r, w_i, b_r, b_i, s, p, op, d):
    def norm(w):
        w = w - jnp.mean(w)
        return w / jnp.sum(w * w)
    wr, wi = norm(w_r), norm(w_i)
    xr, xi = jnp.real(x), jnp.imag(x)
    real = (_ref_conv_transpose2d(xr, wr, b_r, s, p, op, d)
            - _ref_conv_transpose2d(xi, wi, b_i, s, p, op, d))
    imag = (_ref_conv_transpose2d(xi, wr, b_r, s, p, op, d)
            + _ref_conv_transpose2d(xr, wi, b_i, s, p, op, d))
    return jax.lax.complex(real, imag)


# ---------------------------------- main ----------------------------------- #
if __name__ == "__main__":
    B, Cin, Cout, H, W = 2, 4, 4, 16, 16
    kernel_size, stride, padding, output_padding, dilation = 3, 2, 1, 1, 1

    key = jax.random.PRNGKey(0)
    k_xr, k_xi, k_wr, k_wi, k_br, k_bi = jax.random.split(key, 6)

    x = jax.lax.complex(
        jax.random.normal(k_xr, (B, Cin, H, W), jnp.float32),
        jax.random.normal(k_xi, (B, Cin, H, W), jnp.float32))   # complex64

    # ConvTranspose2d weights: (in_channels, out_channels/groups, kH, kW), groups=1
    w_r = jax.random.normal(k_wr, (Cin, Cout, kernel_size, kernel_size), jnp.float32)
    w_i = jax.random.normal(k_wi, (Cin, Cout, kernel_size, kernel_size), jnp.float32)
    b_r = jax.random.normal(k_br, (Cout,), jnp.float32) * 0.1
    b_i = jax.random.normal(k_bi, (Cout,), jnp.float32) * 0.1

    ref = _reference(x, w_r, w_i, b_r, b_i,
                     stride, padding, output_padding, dilation)
    ref = jax.block_until_ready(ref)

    # 1) f32 path: tight structural-correctness check of the phase decomposition.
    out_f32 = normalized_complex_conv_transpose2d(
        x, w_r, w_i, b_r, b_i,
        stride=stride, padding=padding,
        output_padding=output_padding, dilation=dilation,
        compute_dtype=jnp.float32)
    out_f32 = jax.block_until_ready(out_f32)
    assert out_f32.shape == ref.shape, (out_f32.shape, ref.shape)
    err_f32 = float(jnp.max(jnp.abs(out_f32 - ref)))
    assert err_f32 < 1e-4, f"f32 mismatch vs reference: max |err| = {err_f32}"

    # 2) bf16 streams (performance default): f32 accumulation, looser tolerance.
    out_bf16 = normalized_complex_conv_transpose2d(
        x, w_r, w_i, b_r, b_i,
        stride=stride, padding=padding,
        output_padding=output_padding, dilation=dilation)
    out_bf16 = jax.block_until_ready(out_bf16)
    assert out_bf16.shape == ref.shape, (out_bf16.shape, ref.shape)
    err_bf16 = float(jnp.max(jnp.abs(out_bf16 - ref)))
    assert err_bf16 < 5e-3, f"bf16 mismatch vs reference: max |err| = {err_bf16}"

    print("KERNEL_OK")
</pallas_src>

<mosaic_0001>
module attributes {stable_mosaic.version = 11 : i64} {
  func.func @_ncct2d_kernel(%arg0: i32, %arg1: i32, %arg2: memref<1x32x384xf32, #tpu.memory_space<vmem>>, %arg3: memref<32x32xf32, #tpu.memory_space<vmem>>, %arg4: memref<32x1xf32, #tpu.memory_space<vmem>>, %arg5: memref<1x32x384xf32, #tpu.memory_space<vmem>>) attributes {dimension_semantics = [#tpu.dimension_semantics<parallel>, #tpu.dimension_semantics<parallel>], iteration_bounds = array<i64: 2, 1>, scalar_prefetch = 0 : i64, scratch_operands = 0 : i64, tpu.core_type = #tpu.core_type<tc>, window_params = [{transform_indices = @transform_0, window_bounds = array<i64: 1, 32, 384>}, {pipeline_mode = #tpu.pipeline_mode<synchronous>, transform_indices = @transform_1, window_bounds = array<i64: 32, 32>}, {pipeline_mode = #tpu.pipeline_mode<synchronous>, transform_indices = @transform_2, window_bounds = array<i64: 32, 1>}, {transform_indices = @transform_3, window_bounds = array<i64: 1, 32, 384>}]} {
    %c0 = arith.constant 0 : index
    %c0_0 = arith.constant 0 : index
    %0 = vector.load %arg3[%c0, %c0_0] : memref<32x32xf32, #tpu.memory_space<vmem>>, vector<32x32xf32>
    %c0_1 = arith.constant 0 : index
    %c0_2 = arith.constant 0 : index
    %c0_3 = arith.constant 0 : index
    %1 = vector.load %arg2[%c0_1, %c0_2, %c0_3] : memref<1x32x384xf32, #tpu.memory_space<vmem>>, vector<1x32x384xf32>
    %2 = vector.shape_cast %1 : vector<1x32x384xf32> to vector<32x384xf32>
    %cst = arith.constant dense<0.000000e+00> : vector<32x384xf32>
    %3 = tpu.matmul %0, %2, %cst {dimension_numbers = #tpu.dot_dimension_numbers<[1], [0], [0], [1], [0, 0, 1, 1], [], []>} : vector<32x32xf32>, vector<32x384xf32>, vector<32x384xf32> -> vector<32x384xf32>
    %c0_4 = arith.constant 0 : index
    %c0_5 = arith.constant 0 : index
    %4 = vector.load %arg4[%c0_4, %c0_5] : memref<32x1xf32, #tpu.memory_space<vmem>>, vector<32x1xf32>
    %5 = vector.broadcast %4 : vector<32x1xf32> to vector<32x384xf32>
    %6 = arith.addf %3, %5 : vector<32x384xf32>
    %c0_6 = arith.constant 0 : index
    %c0_7 = arith.constant 0 : index
    %c0_8 = arith.constant 0 : index
    %7 = vector.load %arg5[%c0_6, %c0_7, %c0_8] : memref<1x32x384xf32, #tpu.memory_space<vmem>>, vector<1x32x384xf32>
    %8 = vector.shape_cast %7 : vector<1x32x384xf32> to vector<32x384xf32>
    %9 = vector.shape_cast %6 : vector<32x384xf32> to vector<1x32x384xf32>
    tpu.vector_store %arg5[%c0_6, %c0_7, %c0_8], %9 {strides = array<i32>} : memref<1x32x384xf32, #tpu.memory_space<vmem>>, vector<1x32x384xf32>,
    return
  }
  func.func @transform_0(%arg0: i32, %arg1: i32) -> (i32, i32, i32) {
    %c0_i32 = arith.constant 0 : i32
    %c0_i32_0 = arith.constant 0 : i32
    return %arg0, %c0_i32, %arg1 : i32, i32, i32
  }
  func.func @transform_1(%arg0: i32, %arg1: i32) -> (i32, i32) {
    %c0_i32 = arith.constant 0 : i32
    %c0_i32_0 = arith.constant 0 : i32
    %c0_i32_1 = arith.constant 0 : i32
    return %c0_i32, %c0_i32_0 : i32, i32
  }
  func.func @transform_2(%arg0: i32, %arg1: i32) -> (i32, i32) {
    %c0_i32 = arith.constant 0 : i32
    %c0_i32_0 = arith.constant 0 : i32
    %c0_i32_1 = arith.constant 0 : i32
    return %c0_i32, %c0_i32_0 : i32, i32
  }
  func.func @transform_3(%arg0: i32, %arg1: i32) -> (i32, i32, i32) {
    %c0_i32 = arith.constant 0 : i32
    %c0_i32_0 = arith.constant 0 : i32
    return %arg0, %c0_i32, %arg1 : i32, i32, i32
  }
}

</mosaic_0001>

<llo_original>
// kernel: tpu_custom_call.1
$region0: #{tpu_custom_call.1}
  #allocation0 [shape = 'u32[]', space=smem, size = 0x4, offset = 0x4, fixed_abs, tag = 'smem constant byte address 0x4 - core index']
  #allocation1 [shape = 'u32[144,128]{1,0:T(1,128)}', space=vmem, size = 0x12000, scoped, tag = 'internal scratch']
  %s0 = inlined_call_operand.hbm [shape: f32[2,32,384], index: 0, kind: input, shape index: {}]
  %s1 = inlined_call_operand.vmem [shape: f32[32,32], index: 1, kind: input, shape index: {}]
  %s2 = inlined_call_operand.vmem [shape: f32[32,1], index: 2, kind: input, shape index: {}]
  %s3 = inlined_call_operand.hbm [shape: f32[2,32,384], index: 3, kind: output, shape index: {}]
  %s4 = sld [smem:[#allocation0]]
  $region49: #{tpu_custom_call.1} parent=0
    _
  %s6 = ssub.s32 1, %s4
  %s7 = scalar_select 0, %s6, %s4
  $region1: #{tpu_custom_call.1} parent=0
    #allocation2 [shape = 'u8[98304]{0}', space=vmem, size = 0x18000, scoped, tag = 'input window, operand 0']
    #allocation3 [shape = 's32[2]{0}', space=sflag, size = 0x8, scoped, tag = 'scoped memory for tpu_custom_call.1']
    #allocation4 [shape = 's32[2]{0}', space=sflag, size = 0x8, scoped, tag = 'scoped memory for tpu_custom_call.1']
    #allocation5 [shape = 'u8[98304]{0}', space=vmem, size = 0x18000, scoped, tag = 'output window, operand 0']
    %8 = vsyncpa [#allocation3], 0
    %s9 = scalar_lea.sflag [#allocation3], 1
    %10 = vsyncpa %s9, 0
    %11 = vsyncpa [#allocation4], 0
    %s12 = scalar_lea.sflag [#allocation4], 1
    %13 = vsyncpa %s12, 0
    loop: start=0, step=1, limit=4
    $region2: #{tpu_custom_call.1} parent=1 // loop_pre_header
      _
    $region3: #{tpu_custom_call.1} parent=1 // loop_header
      %s15 = sphi 0, %s19
      %p16 = scmp.ge.s32.totalorder %s15, 4
      %s22 = sphi 0, %s34
      %s23 = sphi 0, %s30
      %s24 = sphi 0, %s22
      %s25 = sphi 0, %s23
      %s26 = sphi 0, %s24
      %s27 = sphi 0, %s25
      %s39 = sphi 0, %s41
      %s42 = sphi 0, %s39
      %s43 = sphi 0, %s42
      %s59 = sphi 0, %s43
      %s63 = sphi 0, %s63
      %s65 = sphi 0, %s63
      %s66 = sphi 0, %s65
      %s80 = sphi 0, %s66
      %s84 = sphi 0, %s84
      %s86 = sphi 0, %s84
      %s87 = sphi 0, %s86
      %s101 = sphi 0, %s87
      %s109 = sphi 0, %s111
      %s112 = sphi 0, %s109
      %s113 = sphi 0, %s112
      %s129 = sphi 0, %s113
    $region4: #{tpu_custom_call.1} parent=1 // loop_header_branch
      %18 = sbr.rel (%p16) target = $region8
    $region5: #{tpu_custom_call.1} parent=1 // loop_body
      %s20 = ssub.s32 %s15, 1
      %s21 = ssub.s32 %s15, 2
      %s28 = sadd.s32 1, %s23
      %p29 = scmp.ge.s32.totalorder %s28, 1
      %s30 = scalar_select %p29, 0, %s28
      %s31 = sadd.s32 1, %s22
      %s32 = scalar_select %p29, %s31, %s22
      %p33 = scmp.ge.s32.totalorder %s32, 2
      %s34 = scalar_select %p33, 0, %s32
      %s35 = ssub.s32 %s22, %s34
      %s36 = ssub.s32 %s23, %s30
      %s37 = sor.u32 %s35, %s36
      %p38 = scmp.eq.s32.totalorder %s37, 0
      %s40 = sadd.s32 %s39, 1
      %s41 = scalar_select %p38, %s39, %s40
      %p44 = pneg %p38
      %p45 = scmp.eq.s32.totalorder %s15, 1
      %p46 = por %p44, %p45
      %p47 = scmp.ne.s32.totalorder %s39, %s42
      %p48 = scmp.eq.s32.totalorder %s15, 0
      %p49 = por %p47, %p48
      %p50 = scmp.ne.s32.totalorder %s39, %s42
      %p51 = scmp.eq.s32.totalorder %s20, 1
      %p52 = por %p50, %p51
      %p53 = scmp.ne.s32.totalorder %s42, %s43
      %p54 = scmp.eq.s32.totalorder %s20, 0
      %p55 = por %p53, %p54
      %p56 = scmp.ne.s32.totalorder %s42, %s43
      %p57 = scmp.eq.s32.totalorder %s21, 1
      %p58 = por %p56, %p57
      %p60 = scmp.ne.s32.totalorder %s43, %s59
      %p61 = scmp.eq.s32.totalorder %s21, 0
      %p62 = por %p60, %p61
      %s64 = sadd.s32 %s63, 1
      %p67 = scmp.eq.s32.totalorder %s15, 1
      %p68 = scmp.ne.s32.totalorder %s63, %s65
      %p69 = scmp.eq.s32.totalorder %s15, 0
      %p70 = por %p68, %p69
      %p71 = scmp.ne.s32.totalorder %s63, %s65
      %p72 = scmp.eq.s32.totalorder %s20, 1
      %p73 = por %p71, %p72
      %p74 = scmp.ne.s32.totalorder %s65, %s66
      %p75 = scmp.eq.s32.totalorder %s20, 0
      %p76 = por %p74, %p75
      %p77 = scmp.ne.s32.totalorder %s65, %s66
      %p78 = scmp.eq.s32.totalorder %s21, 1
      %p79 = por %p77, %p78
      %p81 = scmp.ne.s32.totalorder %s66, %s80
      %p82 = scmp.eq.s32.totalorder %s21, 0
      %p83 = por %p81, %p82
      %s85 = sadd.s32 %s84, 1
      %p88 = scmp.eq.s32.totalorder %s15, 1
      %p89 = scmp.ne.s32.totalorder %s84, %s86
      %p90 = scmp.eq.s32.totalorder %s15, 0
      %p91 = por %p89, %p90
      %p92 = scmp.ne.s32.totalorder %s84, %s86
      %p93 = scmp.eq.s32.totalorder %s20, 1
      %p94 = por %p92, %p93
      %p95 = scmp.ne.s32.totalorder %s86, %s87
      %p96 = scmp.eq.s32.totalorder %s20, 0
      %p97 = por %p95, %p96
      %p98 = scmp.ne.s32.totalorder %s86, %s87
      %p99 = scmp.eq.s32.totalorder %s21, 1
      %p100 = por %p98, %p99
      %p102 = scmp.ne.s32.totalorder %s87, %s101
      %p103 = scmp.eq.s32.totalorder %s21, 0
      %p104 = por %p102, %p103
      %s105 = ssub.s32 %s22, %s34
      %s106 = ssub.s32 %s23, %s30
      %s107 = sor.u32 %s105, %s106
      %p108 = scmp.eq.s32.totalorder %s107, 0
      %s110 = sadd.s32 %s109, 1
      %s111 = scalar_select %p108, %s109, %s110
      %p114 = pneg %p108
      %p115 = scmp.eq.s32.totalorder %s15, 1
      %p116 = por %p114, %p115
      %p117 = scmp.ne.s32.totalorder %s109, %s112
      %p118 = scmp.eq.s32.totalorder %s15, 0
      %p119 = por %p117, %p118
      %p120 = scmp.ne.s32.totalorder %s109, %s112
      %p121 = scmp.eq.s32.totalorder %s20, 1
      %p122 = por %p120, %p121
      %p123 = scmp.ne.s32.totalorder %s112, %s113
      %p124 = scmp.eq.s32.totalorder %s20, 0
      %p125 = por %p123, %p124
      %p126 = scmp.ne.s32.totalorder %s112, %s113
      %p127 = scmp.eq.s32.totalorder %s21, 1
      %p128 = por %p126, %p127
      %p130 = scmp.ne.s32.totalorder %s113, %s129
      %p131 = scmp.eq.s32.totalorder %s21, 0
      %p132 = por %p130, %p131
      %p133 = scmp.le.s32.totalorder 1, %s15
      %p134 = scmp.lt.s32.totalorder %s15, 3
      %p135 = pnand %p133, %p134
      %p136 = pneg %p135
      // Predicated region
      $region9: #{tpu_custom_call.1} parent=5 // pred_check
        _
      $region10: #{tpu_custom_call.1} parent=5 // pred_check_branch
        %138 = sbr.rel (%p135) target = $region12
      $region11: #{tpu_custom_call.1} parent=5 // pred_region
        %s139 = ssub.s32 %s15, 1
        // Predicated region
        $region13: #{tpu_custom_call.1} parent=11 // pred_check
          %p140 = pneg %p76
        $region14: #{tpu_custom_call.1} parent=11 // pred_check_branch
          %142 = sbr.rel (%p140) target = $region16
        $region15: #{tpu_custom_call.1} parent=11 // pred_region
          _
        $region16: #{tpu_custom_call.1} parent=11 // pred_fallthru
          _
        // Predicated region
        $region17: #{tpu_custom_call.1} parent=11 // pred_check
          %p143 = pneg %p97
        $region18: #{tpu_custom_call.1} parent=11 // pred_check_branch
          %145 = sbr.rel (%p143) target = $region20
        $region19: #{tpu_custom_call.1} parent=11 // pred_region
          _
        $region20: #{tpu_custom_call.1} parent=11 // pred_fallthru
          _
      $region12: #{tpu_custom_call.1} parent=5 // pred_fallthru
        _
      %p146 = scmp.lt.s32.totalorder %s15, 2
      // Predicated region
      $region21: #{tpu_custom_call.1} parent=5 // pred_check
        %p147 = pneg %p146
      $region22: #{tpu_custom_call.1} parent=5 // pred_check_branch
        %149 = sbr.rel (%p147) target = $region24
      $region23: #{tpu_custom_call.1} parent=5 // pred_region
        // Predicated region
        $region25: #{tpu_custom_call.1} parent=23 // pred_check
          %p150 = pneg %p49
        $region26: #{tpu_custom_call.1} parent=23 // pred_check_branch
          %152 = sbr.rel (%p150) target = $region28
        $region27: #{tpu_custom_call.1} parent=23 // pred_region
          %s153 = sand.u32 %s39, 1
          %s154 = scalar_lea.sflag [#allocation3], %s153
          %s155 = sand.u32 %s39, 1
          %s156 = smul.addr %s155, 96
          %s157 = scalar_lea.vmem [#allocation2], %s156
          %s158 = smul.u32 3, %s23
          %s160 = ssub.s32 1536, 1536
          %161 = vsyncadd %s154, %s160
          %s162 = smul.addr %s22, 12
          %s163 = sadd.s32 %s158, %s162
          %s164 = smul.addr %s163, 128
          %s165 = scalar_lea.hbm %s0, %s164
          %s166 = sshll.u32 %s157, 4
          %s167 = int_to_ptr.vmem [resolvable:$true] %s166
          %172 = dma.hbm_to_vmem [thread:$0]  %s165, 1536, %s167, %s154, 384, 384, 24
        $region28: #{tpu_custom_call.1} parent=23 // pred_fallthru
          _
      $region24: #{tpu_custom_call.1} parent=5 // pred_fallthru
        _
      %p173 = scmp.le.s32.totalorder 1, %s15
      %p174 = scmp.lt.s32.totalorder %s15, 3
      %p175 = pnand %p173, %p174
      %p176 = pneg %p175
      // Predicated region
      $region29: #{tpu_custom_call.1} parent=5 // pred_check
        _
      $region30: #{tpu_custom_call.1} parent=5 // pred_check_branch
        %178 = sbr.rel (%p175) target = $region32
      $region31: #{tpu_custom_call.1} parent=5 // pred_region
        %s179 = ssub.s32 %s15, 1
        %s180 = sand.u32 %s42, 1
        %s181 = scalar_lea.sflag [#allocation3], %s180
        %s182 = sand.u32 %s42, 1
        %s183 = smul.addr %s182, 96
        %s184 = scalar_lea.vmem [#allocation2], %s183
        // Predicated region
        $region33: #{tpu_custom_call.1} parent=31 // pred_check
          %p185 = pneg %p55
        $region34: #{tpu_custom_call.1} parent=31 // pred_check_branch
          %187 = sbr.rel (%p185) target = $region36
        $region35: #{tpu_custom_call.1} parent=31 // pred_region
          %188 = dma.done %s181, 1536
        $region36: #{tpu_custom_call.1} parent=31 // pred_fallthru
          _
        %s189 = sand.u32 %s42, 1
        %s190 = scalar_lea.sflag [#allocation3], %s189
        %s191 = sand.u32 %s42, 1
        %s192 = smul.addr %s191, 96
        %s193 = scalar_lea.vmem [#allocation2], %s192
        %p194 = pneg %p55
        %p195 = pneg %p52
        %p196 = pneg %p76
        %p197 = pneg %p73
        %p198 = pneg %p97
        %p199 = pneg %p94
        %p200 = pneg %p125
        %p201 = pneg %p122
        %s202 = sand.u32 %s112, 1
        %s203 = scalar_lea.sflag [#allocation4], %s202
        %s204 = sand.u32 %s112, 1
        %s205 = smul.addr %s204, 96
        %s206 = scalar_lea.vmem [#allocation5], %s205
        %s207 = smul.u32 3, %s25
        %s208 = smul.u32 3, %s25
        %v209 = vld [vmem:[%s1] sm:$0xff]
        %v210 = vld [vmem:[%s1 + $0x8] sm:$0xff]
        %v211 = vld [vmem:[%s1 + $0x10] sm:$0xff]
        %v212 = vld [vmem:[%s1 + $0x18] sm:$0xff]
        %v213 = vld [vmem:[%s184] sm:$0xff]
        %v214 = vld [vmem:[%s184 + $0x8] sm:$0xff]
        %v215 = vld [vmem:[%s184 + $0x10] sm:$0xff]
        %v216 = vld [vmem:[%s184 + $0x18] sm:$0xff]
        %v217 = vld [vmem:[%s184 + $0x20] sm:$0xff]
        %v218 = vld [vmem:[%s184 + $0x28] sm:$0xff]
        %v219 = vld [vmem:[%s184 + $0x30] sm:$0xff]
        %v220 = vld [vmem:[%s184 + $0x38] sm:$0xff]
        %v221 = vld [vmem:[%s184 + $0x40] sm:$0xff]
        %v222 = vld [vmem:[%s184 + $0x48] sm:$0xff]
        %v223 = vld [vmem:[%s184 + $0x50] sm:$0xff]
        %v224 = vld [vmem:[%s184 + $0x58] sm:$0xff]
        %v225 = vld [vmem:[%s2] sm:$0xff]
        %v226 = vld [vmem:[%s2 + $0x8] sm:$0xff]
        %v227 = vld [vmem:[%s2 + $0x10] sm:$0xff]
        %v228 = vld [vmem:[%s2 + $0x18] sm:$0xff]
        %230 = vset.pattern.permute.xlu0 0
        %231 = vperm.xlu0 %230, %v225
        %v232 = vpop.permute.xlu0 %231
        %235 = vset.pattern.permute.xlu0 0
        %236 = vperm.xlu0 %235, %v226
        %v237 = vpop.permute.xlu0 %236
        %240 = vset.pattern.permute.xlu0 0
        %241 = vperm.xlu0 %240, %v227
        %v242 = vpop.permute.xlu0 %241
        %245 = vset.pattern.permute.xlu0 0
        %246 = vperm.xlu0 %245, %v228
        %v247 = vpop.permute.xlu0 %246
        %vm249 = vcmask 261120
        %v251 = vsel %vm249, %v209, 0
        %v254 = vsel %vm249, %v210, 0
        %v257 = vsel %vm249, %v211, 0
        %v260 = vsel %vm249, %v212, 0
        %262 = vmatprep.subr.mxu0 0.0
        %263 = vmatpush1.msra.mxu0 0.0
        %264 = vmatprep.subr.mxu0 0.0
        %265 = vmatpush1.msra.mxu0 0.0
        %266 = vmatprep.subr.mxu0 0.0
        %267 = vmatpush1.msra.mxu0 0.0
        %268 = vmatprep.subr.mxu0 0.0
        %269 = vmatpush1.msra.mxu0 0.0
        %270 = vmatprep.subr.mxu0 0.0
        %271 = vmatpush1.msra.mxu0 0.0
        %272 = vmatprep.subr.mxu0 0.0
        %273 = vmatpush1.msra.mxu0 0.0
        %274 = vmatprep.subr.mxu0 0.0
        %275 = vmatpush1.msra.mxu0 0.0
        %276 = vmatprep.subr.mxu0 0.0
        %277 = vmatpush1.msra.mxu0 0.0
        %278 = vmatprep.subr.mxu0 0.0
        %279 = vmatpush1.msra.mxu0 0.0
        %280 = vmatprep.subr.mxu0 0.0
        %281 = vmatpush1.msra.mxu0 0.0
        %282 = vmatprep.subr.mxu0 0.0
        %283 = vmatpush1.msra.mxu0 0.0
        %284 = vmatprep.subr.mxu0 0.0
        %285 = vmatpush1.msra.mxu0 0.0
        %286 = vmatprep.subr.mxu0 %v223
        %287 = vmatpush1.msra.mxu0 %v222
        %288 = vmatprep.subr.mxu0 %v220
        %289 = vmatpush1.msra.mxu0 %v219
        %290 = vmatprep.subr.mxu0 %v217
        %291 = vmatpush1.msra.mxu0 %v216
        %292 = vmatprep.subr.mxu0 %v214
        %293 = vmatpush1.msra.mxu0 %v213
        %294 = vmatprep.subr.mxu0 0.0
        %295 = vmatpush2.msra.mxu0 0.0
        %296 = vmatprep.subr.mxu0 0.0
        %297 = vmatpush2.msra.mxu0 0.0
        %298 = vmatprep.subr.mxu0 0.0
        %299 = vmatpush2.msra.mxu0 0.0
        %300 = vmatprep.subr.mxu0 0.0
        %301 = vmatpush2.msra.mxu0 0.0
        %302 = vmatprep.subr.mxu0 0.0
        %303 = vmatpush2.msra.mxu0 0.0
        %304 = vmatprep.subr.mxu0 0.0
        %305 = vmatpush2.msra.mxu0 0.0
        %306 = vmatprep.subr.mxu0 0.0
        %307 = vmatpush2.msra.mxu0 0.0
        %308 = vmatprep.subr.mxu0 0.0
        %309 = vmatpush2.msra.mxu0 0.0
        %310 = vmatprep.subr.mxu0 0.0
        %311 = vmatpush2.msra.mxu0 0.0
        %312 = vmatprep.subr.mxu0 0.0
        %313 = vmatpush2.msra.mxu0 0.0
        %314 = vmatprep.subr.mxu0 0.0
        %315 = vmatpush2.msra.mxu0 0.0
        %316 = vmatprep.subr.mxu0 0.0
        %317 = vmatpush2.msra.mxu0 0.0
        %318 = vmatprep.subr.mxu0 0.0
        %319 = vmatpush2.msra.mxu0 0.0
        %320 = vmatprep.subr.mxu0 0.0
        %321 = vmatpush2.msra.mxu0 0.0
        %322 = vmatprep.subr.mxu0 0.0
        %323 = vmatpush2.msra.mxu0 0.0
        %324 = vmatprep.subr.mxu0 0.0
        %325 = vmatpush2.msra.mxu0 0.0
        %326 = vmatprep.mubr.f32.mxu0 0.0
        %327 = vmatmul.mubr.f32.gmra.mxu0 %v251
        %v328 = vpop.f32.mrf.mxu0
        %v329 = vadd.f32 %v232, %v328
        %v330 = vpop.f32.mrf.mxu0
        %v331 = vadd.f32 %v232, %v330
        %332 = vmatprep.mubr.f32.mxu0 0.0
        %333 = vmatmul.mubr.f32.gmra.mxu0 %v254
        %v334 = vpop.f32.mrf.mxu0
        %v335 = vadd.f32 %v237, %v334
        %v336 = vpop.f32.mrf.mxu0
        %v337 = vadd.f32 %v237, %v336
        %338 = vmatprep.mubr.f32.mxu0 0.0
        %339 = vmatmul.mubr.f32.gmra.mxu0 %v257
        %v340 = vpop.f32.mrf.mxu0
        %v341 = vadd.f32 %v242, %v340
        %v342 = vpop.f32.mrf.mxu0
        %v343 = vadd.f32 %v242, %v342
        %344 = vmatprep.mubr.f32.mxu0 0.0
        %345 = vmatmul.mubr.f32.gmra.mxu0 %v260
        %v346 = vpop.f32.mrf.mxu0
        %v347 = vadd.f32 %v247, %v346
        %v348 = vpop.f32.mrf.mxu0
        %v349 = vadd.f32 %v247, %v348
        %350 = vdwg.mxu0
        %351 = vmatprep.subr.mxu0 0.0
        %352 = vmatpush1.msra.mxu0 0.0
        %353 = vmatprep.subr.mxu0 0.0
        %354 = vmatpush1.msra.mxu0 0.0
        %355 = vmatprep.subr.mxu0 0.0
        %356 = vmatpush1.msra.mxu0 0.0
        %357 = vmatprep.subr.mxu0 0.0
        %358 = vmatpush1.msra.mxu0 0.0
        %359 = vmatprep.subr.mxu0 0.0
        %360 = vmatpush1.msra.mxu0 0.0
        %361 = vmatprep.subr.mxu0 0.0
        %362 = vmatpush1.msra.mxu0 0.0
        %363 = vmatprep.subr.mxu0 0.0
        %364 = vmatpush1.msra.mxu0 0.0
        %365 = vmatprep.subr.mxu0 0.0
        %366 = vmatpush1.msra.mxu0 0.0
        %367 = vmatprep.subr.mxu0 0.0
        %368 = vmatpush1.msra.mxu0 0.0
        %369 = vmatprep.subr.mxu0 0.0
        %370 = vmatpush1.msra.mxu0 0.0
        %371 = vmatprep.subr.mxu0 0.0
        %372 = vmatpush1.msra.mxu0 0.0
        %373 = vmatprep.subr.mxu0 0.0
        %374 = vmatpush1.msra.mxu0 0.0
        %375 = vmatprep.subr.mxu0 0.0
        %376 = vmatpush1.msra.mxu0 %v224
        %377 = vmatprep.subr.mxu0 0.0
        %378 = vmatpush1.msra.mxu0 %v221
        %379 = vmatprep.subr.mxu0 0.0
        %380 = vmatpush1.msra.mxu0 %v218
        %381 = vmatprep.subr.mxu0 0.0
        %382 = vmatpush1.msra.mxu0 %v215
        %383 = vmatprep.subr.mxu0 0.0
        %384 = vmatpush2.msra.mxu0 0.0
        %385 = vmatprep.subr.mxu0 0.0
        %386 = vmatpush2.msra.mxu0 0.0
        %387 = vmatprep.subr.mxu0 0.0
        %388 = vmatpush2.msra.mxu0 0.0
        %389 = vmatprep.subr.mxu0 0.0
        %390 = vmatpush2.msra.mxu0 0.0
        %391 = vmatprep.subr.mxu0 0.0
        %392 = vmatpush2.msra.mxu0 0.0
        %393 = vmatprep.subr.mxu0 0.0
        %394 = vmatpush2.msra.mxu0 0.0
        %395 = vmatprep.subr.mxu0 0.0
        %396 = vmatpush2.msra.mxu0 0.0
        %397 = vmatprep.subr.mxu0 0.0
        %398 = vmatpush2.msra.mxu0 0.0
        %399 = vmatprep.subr.mxu0 0.0
        %400 = vmatpush2.msra.mxu0 0.0
        %401 = vmatprep.subr.mxu0 0.0
        %402 = vmatpush2.msra.mxu0 0.0
        %403 = vmatprep.subr.mxu0 0.0
        %404 = vmatpush2.msra.mxu0 0.0
        %405 = vmatprep.subr.mxu0 0.0
        %406 = vmatpush2.msra.mxu0 0.0
        %407 = vmatprep.subr.mxu0 0.0
        %408 = vmatpush2.msra.mxu0 0.0
        %409 = vmatprep.subr.mxu0 0.0
        %410 = vmatpush2.msra.mxu0 0.0
        %411 = vmatprep.subr.mxu0 0.0
        %412 = vmatpush2.msra.mxu0 0.0
        %413 = vmatprep.subr.mxu0 0.0
        %414 = vmatpush2.msra.mxu0 0.0
        %415 = vmatprep.mubr.f32.mxu0 0.0
        %416 = vmatmul.mubr.f32.gmra.mxu0 %v251
        %v417 = vpop.f32.mrf.mxu0
        %v418 = vadd.f32 %v232, %v417
        %v419 = vpop.f32.mrf.mxu0
        %420 = vmatprep.mubr.f32.mxu0 0.0
        %421 = vmatmul.mubr.f32.gmra.mxu0 %v254
        %v422 = vpop.f32.mrf.mxu0
        %v423 = vadd.f32 %v237, %v422
        %v424 = vpop.f32.mrf.mxu0
        %425 = vmatprep.mubr.f32.mxu0 0.0
        %426 = vmatmul.mubr.f32.gmra.mxu0 %v257
        %v427 = vpop.f32.mrf.mxu0
        %v428 = vadd.f32 %v242, %v427
        %v429 = vpop.f32.mrf.mxu0
        %430 = vmatprep.mubr.f32.mxu0 0.0
        %431 = vmatmul.mubr.f32.gmra.mxu0 %v260
        %v432 = vpop.f32.mrf.mxu0
        %v433 = vadd.f32 %v247, %v432
        %v434 = vpop.f32.mrf.mxu0
        %435 = vdwg.mxu0
        %436 = vst [vmem:[%s206] sm:$0xff] %v329
        %437 = vst [vmem:[%s206 + $0x8] sm:$0xff] %v331
        %438 = vst [vmem:[%s206 + $0x10] sm:$0xff] %v418
        %439 = vst [vmem:[%s206 + $0x18] sm:$0xff] %v335
        %440 = vst [vmem:[%s206 + $0x20] sm:$0xff] %v337
        %441 = vst [vmem:[%s206 + $0x28] sm:$0xff] %v423
        %442 = vst [vmem:[%s206 + $0x30] sm:$0xff] %v341
        %443 = vst [vmem:[%s206 + $0x38] sm:$0xff] %v343
        %444 = vst [vmem:[%s206 + $0x40] sm:$0xff] %v428
        %445 = vst [vmem:[%s206 + $0x48] sm:$0xff] %v347
        %446 = vst [vmem:[%s206 + $0x50] sm:$0xff] %v349
        %447 = vst [vmem:[%s206 + $0x58] sm:$0xff] %v433
        %s448 = sand.u32 %s112, 1
        %s449 = scalar_lea.sflag [#allocation4], %s448
        %s450 = sand.u32 %s112, 1
        %s451 = smul.addr %s450, 96
        %s452 = scalar_lea.vmem [#allocation5], %s451
        // Predicated region
        $region37: #{tpu_custom_call.1} parent=31 // pred_check
          %p453 = pneg %p122
        $region38: #{tpu_custom_call.1} parent=31 // pred_check_branch
          %455 = sbr.rel (%p453) target = $region40
        $region39: #{tpu_custom_call.1} parent=31 // pred_region
          %s456 = smul.u32 3, %s25
          %s458 = ssub.s32 1536, 1536
          %459 = vsyncadd %s449, %s458
          %s460 = smul.addr %s24, 12
          %s461 = sadd.s32 %s456, %s460
          %s462 = smul.addr %s461, 128
          %s463 = scalar_lea.hbm %s3, %s462
          %s464 = sshll.u32 %s452, 4
          %s465 = int_to_ptr.vmem [resolvable:$true] %s464
          %470 = dma.vmem_to_hbm [thread:$0]  %s465, 1536, %s463, %s449, 384, 384, 24
        $region40: #{tpu_custom_call.1} parent=31 // pred_fallthru
          _
      $region32: #{tpu_custom_call.1} parent=5 // pred_fallthru
        _
      %p471 = scmp.le.s32.totalorder 2, %s15
      // Predicated region
      $region41: #{tpu_custom_call.1} parent=5 // pred_check
        %p472 = pneg %p471
      $region42: #{tpu_custom_call.1} parent=5 // pred_check_branch
        %474 = sbr.rel (%p472) target = $region44
      $region43: #{tpu_custom_call.1} parent=5 // pred_region
        %s475 = ssub.s32 %s15, 2
        // Predicated region
        $region45: #{tpu_custom_call.1} parent=43 // pred_check
          %p476 = pneg %p128
        $region46: #{tpu_custom_call.1} parent=43 // pred_check_branch
          %478 = sbr.rel (%p476) target = $region48
        $region47: #{tpu_custom_call.1} parent=43 // pred_region
          %s479 = sand.u32 %s113, 1
          %s480 = scalar_lea.sflag [#allocation4], %s479
          %s481 = sand.u32 %s113, 1
          %s482 = smul.addr %s481, 96
          %s483 = scalar_lea.vmem [#allocation5], %s482
          %484 = dma.done %s480, 1536
        $region48: #{tpu_custom_call.1} parent=43 // pred_fallthru
          _
      $region44: #{tpu_custom_call.1} parent=5 // pred_fallthru
        _
    $region6: #{tpu_custom_call.1} parent=1 // loop_footer
      %s19 = sadd.s32 1, %s15
    $region7: #{tpu_custom_call.1} parent=1 // loop_footer_branch
      %14 = sbr.rel target = $region3
    $region8: #{tpu_custom_call.1} parent=1 // loop_exit
      _
    %485 = vsyncpa [#allocation3], 1
    %s486 = scalar_lea.sflag [#allocation3], 1
    %487 = vsyncpa %s486, 1
    %488 = vsyncpa [#allocation4], 1
    %s489 = scalar_lea.sflag [#allocation4], 1
    %490 = vsyncpa %s489, 1

</llo_original>
